<compile_context>
chip_gen: v7x
topology: tpu7x:2x2x1
jax: 0.10.0
libtpu: 0.0.40
codegen_flags: <defaults>
</compile_context>

<pallas_src>
import jax
import jax.numpy as jnp
from jax import lax
from jax.experimental import pallas as pl
from jax.experimental.pallas import tpu as pltpu


# ----------------------------------------------------------------------------
# Pallas kernel: fused (gather + fc1) -> ReLU -> fc2 -> ReLU -> fc3, transposed
# ----------------------------------------------------------------------------
def _fused_edge_kernel(idx_ref, cust_ref, prod_ref, b1_ref, w2_ref, b2_ref,
                       w3_ref, b3_ref, o_ref):
    n_c = cust_ref.shape[1]            # customer table size
    n_p = prod_ref.shape[1]            # product table size
    t = idx_ref.shape[1]               # edges in this tile

    src = idx_ref[0:1, :]              # int32 [1, T]
    dst = idx_ref[1:2, :]              # int32 [1, T]

    # One-hot selection matrices (exact 0/1 values in bf16).
    sel_c = jnp.where(
        lax.broadcasted_iota(jnp.int32, (n_c, t), 0) == src, 1.0, 0.0
    ).astype(jnp.bfloat16)                                            # [N_c, T]
    sel_p = jnp.where(
        lax.broadcasted_iota(jnp.int32, (n_p, t), 0) == dst, 1.0, 0.0
    ).astype(jnp.bfloat16)                                            # [N_p, T]

    # Fused gather + HANConv projection + fc1 (tables hold emb @ W_han @ W1).
    h = (jnp.dot(cust_ref[...], sel_c, preferred_element_type=jnp.float32)
         + jnp.dot(prod_ref[...], sel_p, preferred_element_type=jnp.float32)
         + b1_ref[...])                                               # f32 [128, T]
    h = jnp.maximum(h, 0.0)

    # fc2 (BN1 folded in), ReLU.
    h = jnp.dot(w2_ref[...], h.astype(jnp.bfloat16),
                preferred_element_type=jnp.float32) + b2_ref[...]     # f32 [32, T]
    h = jnp.maximum(h, 0.0)

    # fc3 (BN2 folded in); computed with 8 padded output rows, store dim_out.
    o = jnp.dot(w3_ref[...], h.astype(jnp.bfloat16),
                preferred_element_type=jnp.float32) + b3_ref[...]     # f32 [8, T]
    o_ref[...] = o[: o_ref.shape[0], :]


def _round_up(x, m):
    return ((x + m - 1) // m) * m


def fused_edge_classifier(src_dst, fp, *, dim_out, tile_e_max=8192):
    """src_dst: int32 [2, E] -> logits f32 [dim_out, E] (transposed)."""
    e = src_dst.shape[1]

    # Near-equal, 128-aligned tiles: minimal tail padding and >=2 tiles for
    # large E so the 1-D parallel grid can shard across v7x's 2 TensorCores.
    n_tiles = max(1, pl.cdiv(e, tile_e_max))
    tile_e = _round_up(pl.cdiv(e, n_tiles), 128)
    e_pad = n_tiles * tile_e
    if e_pad != e:
        src_dst = jnp.pad(src_dst, ((0, 0), (0, e_pad - e)))

    def resident(a):  # small weights/tables: same block every step -> VMEM-resident
        return pl.BlockSpec(a.shape, lambda i: (0, 0))

    out_t = pl.pallas_call(
        _fused_edge_kernel,
        out_shape=jax.ShapeDtypeStruct((dim_out, e_pad), jnp.float32),
        grid=(n_tiles,),
        in_specs=[
            # per-edge int32 (src, dst) indices: 8 B/edge streamed over the grid
            pl.BlockSpec((2, tile_e), lambda i: (0, i)),
            resident(fp["cust_t"]), resident(fp["prod_t"]),
            resident(fp["b1_t"]),
            resident(fp["w2_t"]), resident(fp["b2_t"]),
            resident(fp["w3_t"]), resident(fp["b3_t"]),
        ],
        # transposed output block: 8 B/edge writeback, lane-dense (tile_e % 128 == 0)
        out_specs=pl.BlockSpec((dim_out, tile_e), lambda i: (0, i)),
        compiler_params=pltpu.CompilerParams(dimension_semantics=("parallel",)),
    )(src_dst, fp["cust_t"], fp["prod_t"], fp["b1_t"], fp["w2_t"],
      fp["b2_t"], fp["w3_t"], fp["b3_t"])

    return out_t[:, :e]


# ----------------------------------------------------------------------------
# Parameter folding (linear algebra done once per forward, in f32, plain JAX)
# ----------------------------------------------------------------------------
def _fold_parameters(p, x_dict_ids):
    """Fold HANConv projections, constant edge features and eval-mode BN into the MLP."""
    H = p["han_w_customer"].shape[1]
    w1, b1 = p["fc1_w"], p["fc1_b"]

    # fc1 input layout: [cust(H) | prod(H) | size(4) | color(8) | group(4)]
    w1_c = w1[:H]
    w1_p = w1[H:2 * H]
    w1_sz = w1[2 * H:2 * H + 4]
    w1_co = w1[2 * H + 4:2 * H + 12]
    w1_gr = w1[2 * H + 12:2 * H + 16]

    # Constant per-edge features (reference bug: get_mapped_id(builtin id, ...) -> 1)
    size_row = p["size_embedding"][x_dict_ids["size"][1]][None, :]
    color_row = p["color_embedding"][x_dict_ids["color"][1]][None, :]
    group_row = p["group_embedding"][x_dict_ids["group"][1]][None, :]

    # Per-node fc1 contributions: gather + HANConv projection + fc1 fused into tables.
    cust_fc1 = (p["customer_embedding"] @ p["han_w_customer"]) @ w1_c   # [N_c, 128]
    prod_fc1 = (p["product_embedding"] @ p["han_w_product"]) @ w1_p    # [N_p, 128]

    b1_eff = (
        b1
        + p["han_b_customer"] @ w1_c
        + p["han_b_product"] @ w1_p
        + size_row @ w1_sz
        + color_row @ w1_co
        + group_row @ w1_gr
    )  # [1, 128]

    # Eval-mode BN (running mean=0, var=1): y = x * (gamma/sqrt(1+eps)) + beta,
    # folded into the following linear layer.
    eps = 1e-5
    inv_std = 1.0 / jnp.sqrt(1.0 + eps)
    s1 = inv_std * p["bn1_gamma"]                         # [1, 128]
    s2 = inv_std * p["bn2_gamma"]                         # [1, 32]
    w2_eff = p["fc2_w"] * s1.T                            # [128, 32]
    b2_eff = p["bn1_beta"] @ p["fc2_w"] + p["fc2_b"]      # [1, 32]
    w3_eff = p["fc3_w"] * s2.T                            # [32, dim_out]
    b3_eff = p["bn2_beta"] @ p["fc3_w"] + p["fc3_b"]      # [1, dim_out]

    dim_out = w3_eff.shape[1]
    m_pad = 8  # pad fc3 output rows to a full sublane for a clean matmul layout
    w3_t = jnp.zeros((m_pad, w3_eff.shape[0]), jnp.float32).at[:dim_out].set(w3_eff.T)
    b3_t = jnp.zeros((m_pad, 1), jnp.float32).at[:dim_out].set(b3_eff.T)

    return {
        "cust_t": cust_fc1.T.astype(jnp.bfloat16),    # [128, N_c]
        "prod_t": prod_fc1.T.astype(jnp.bfloat16),    # [128, N_p]
        "b1_t": b1_eff.T.astype(jnp.float32),         # [128, 1]
        "w2_t": w2_eff.T.astype(jnp.bfloat16),        # [32, 128]
        "b2_t": b2_eff.T.astype(jnp.float32),         # [32, 1]
        "w3_t": w3_t.astype(jnp.bfloat16),            # [8, 32]
        "b3_t": b3_t.astype(jnp.float32),             # [8, 1]
        "dim_out": dim_out,
    }


# ----------------------------------------------------------------------------
# HAN forward
# ----------------------------------------------------------------------------
def han_forward(params, x_dict_ids, edge_label_index, *, tile_e_max=8192):
    """Forward pass of the HAN edge classifier.

    x_dict_ids: dict of integer id arrays for 'color', 'size', 'group'.
    edge_label_index: int32 [2, E] (src customer idx, dst product idx).
    Returns f32 [E, dim_out].
    """
    fp = _fold_parameters(params, x_dict_ids)
    src_dst = edge_label_index.astype(jnp.int32)
    logits_t = fused_edge_classifier(
        src_dst, fp, dim_out=fp["dim_out"], tile_e_max=tile_e_max
    )
    return logits_t.T  # [E, dim_out]


# ----------------------------------------------------------------------------
# Pure-JAX reference (unfused, f32) for validation of the folding
# ----------------------------------------------------------------------------
def reference_forward(p, x_dict_ids, edge_label_index):
    eps = 1e-5
    inv_std = 1.0 / jnp.sqrt(1.0 + eps)

    cust_h = p["customer_embedding"] @ p["han_w_customer"] + p["han_b_customer"]
    prod_h = p["product_embedding"] @ p["han_w_product"] + p["han_b_product"]

    src, dst = edge_label_index[0], edge_label_index[1]
    e = src.shape[0]

    size_embed = p["size_embedding"][x_dict_ids["size"]]
    color_embed = p["color_embedding"][x_dict_ids["color"]]
    group_embed = p["group_embedding"][x_dict_ids["group"]]
    size_f = jnp.broadcast_to(size_embed[1], (e, size_embed.shape[1]))
    color_f = jnp.broadcast_to(color_embed[1], (e, color_embed.shape[1]))
    group_f = jnp.broadcast_to(group_embed[1], (e, group_embed.shape[1]))

    ef = jnp.concatenate([cust_h[src], prod_h[dst], size_f, color_f, group_f], axis=-1)

    h = jnp.maximum(ef @ p["fc1_w"] + p["fc1_b"], 0.0)
    h = h * inv_std * p["bn1_gamma"] + p["bn1_beta"]
    h = jnp.maximum(h @ p["fc2_w"] + p["fc2_b"], 0.0)
    h = h * inv_std * p["bn2_gamma"] + p["bn2_beta"]
    return h @ p["fc3_w"] + p["fc3_b"]


# ----------------------------------------------------------------------------
# Deterministic parameter construction
# ----------------------------------------------------------------------------
def make_params(key, *, num_customers, num_products, num_colors, num_sizes,
                num_groups, hidden_channels, dim_out):
    color_dim, size_dim, group_dim = 8, 4, 4
    node_emb_dim = 16

    ks = jax.random.split(key, 16)

    def rnd(k, shape, scale=0.1):
        return (scale * jax.random.normal(k, shape)).astype(jnp.float32)

    return {
        "customer_embedding": rnd(ks[0], (num_customers, node_emb_dim)),
        "product_embedding": rnd(ks[1], (num_products, node_emb_dim)),
        "color_embedding": rnd(ks[2], (num_colors, color_dim)),
        "size_embedding": rnd(ks[3], (num_sizes, size_dim)),
        "group_embedding": rnd(ks[4], (num_groups, group_dim)),
        # HANConv per-type projections: 16 -> hidden
        "han_w_customer": rnd(ks[5], (node_emb_dim, hidden_channels)),
        "han_b_customer": rnd(ks[6], (1, hidden_channels)),
        "han_w_product": rnd(ks[7], (node_emb_dim, hidden_channels)),
        "han_b_product": rnd(ks[8], (1, hidden_channels)),
        # MLP head
        "fc1_w": rnd(ks[9], (hidden_channels * 2 + size_dim + color_dim + group_dim, 128)),
        "fc1_b": rnd(ks[10], (1, 128)),
        "bn1_gamma": jnp.ones((1, 128), jnp.float32),
        "bn1_beta": jnp.zeros((1, 128), jnp.float32),
        "fc2_w": rnd(ks[11], (128, 32)),
        "fc2_b": rnd(ks[12], (1, 32)),
        "bn2_gamma": jnp.ones((1, 32), jnp.float32),
        "bn2_beta": jnp.zeros((1, 32), jnp.float32),
        "fc3_w": rnd(ks[13], (32, dim_out)),
        "fc3_b": rnd(ks[14], (1, dim_out)),
    }


# ----------------------------------------------------------------------------
# main
# ----------------------------------------------------------------------------
if __name__ == "__main__":
    key = jax.random.PRNGKey(0)

    # small synthetic sizes
    num_customers = 16
    num_products = 16
    num_colors = 8
    num_sizes = 8
    num_groups = 8
    hidden_channels = 32
    dim_out = 2
    num_edges = 16

    params = make_params(
        key,
        num_customers=num_customers,
        num_products=num_products,
        num_colors=num_colors,
        num_sizes=num_sizes,
        num_groups=num_groups,
        hidden_channels=hidden_channels,
        dim_out=dim_out,
    )

    k1, k2, k3, k4, k5 = jax.random.split(jax.random.PRNGKey(1), 5)
    x_dict_ids = {
        "color": jax.random.randint(k1, (num_colors,), 0, num_colors),
        "size": jax.random.randint(k2, (num_sizes,), 0, num_sizes),
        "group": jax.random.randint(k3, (num_groups,), 0, num_groups),
    }
    edge_label_index = jnp.stack(
        [
            jax.random.randint(k4, (num_edges,), 0, num_customers),
            jax.random.randint(k5, (num_edges,), 0, num_products),
        ],
        axis=0,
    ).astype(jnp.int32)

    out = han_forward(params, x_dict_ids, edge_label_index)
    out = jax.block_until_ready(out)

    assert out.shape == (num_edges, dim_out), out.shape
    assert out.dtype == jnp.float32
    assert bool(jnp.all(jnp.isfinite(out)))

    # Validate the algebraic folding against the unfused f32 reference
    # (loose tolerance: kernel uses bf16 operands on the MXU).
    ref = jax.block_until_ready(reference_forward(params, x_dict_ids, edge_label_index))
    max_err = float(jnp.max(jnp.abs(out - ref)))
    assert max_err < 5e-2, f"max abs error vs reference: {max_err}"

    print("KERNEL_OK")
</pallas_src>

<mosaic_0001>
module attributes {stable_mosaic.version = 11 : i64} {
  func.func @_fused_edge_kernel(%arg0: i32, %arg1: memref<2x128xi32, #tpu.memory_space<vmem>>, %arg2: memref<128x16xbf16, #tpu.memory_space<vmem>>, %arg3: memref<128x16xbf16, #tpu.memory_space<vmem>>, %arg4: memref<128x1xf32, #tpu.memory_space<vmem>>, %arg5: memref<32x128xbf16, #tpu.memory_space<vmem>>, %arg6: memref<32x1xf32, #tpu.memory_space<vmem>>, %arg7: memref<8x32xbf16, #tpu.memory_space<vmem>>, %arg8: memref<8x1xf32, #tpu.memory_space<vmem>>, %arg9: memref<2x128xf32, #tpu.memory_space<vmem>>) attributes {dimension_semantics = [#tpu.dimension_semantics<parallel>], iteration_bounds = array<i64: 1>, scalar_prefetch = 0 : i64, scratch_operands = 0 : i64, tpu.core_type = #tpu.core_type<tc>, window_params = [{transform_indices = @transform_0, window_bounds = array<i64: 2, 128>}, {pipeline_mode = #tpu.pipeline_mode<synchronous>, transform_indices = @transform_1, window_bounds = array<i64: 128, 16>}, {pipeline_mode = #tpu.pipeline_mode<synchronous>, transform_indices = @transform_2, window_bounds = array<i64: 128, 16>}, {pipeline_mode = #tpu.pipeline_mode<synchronous>, transform_indices = @transform_3, window_bounds = array<i64: 128, 1>}, {pipeline_mode = #tpu.pipeline_mode<synchronous>, transform_indices = @transform_4, window_bounds = array<i64: 32, 128>}, {pipeline_mode = #tpu.pipeline_mode<synchronous>, transform_indices = @transform_5, window_bounds = array<i64: 32, 1>}, {pipeline_mode = #tpu.pipeline_mode<synchronous>, transform_indices = @transform_6, window_bounds = array<i64: 8, 32>}, {pipeline_mode = #tpu.pipeline_mode<synchronous>, transform_indices = @transform_7, window_bounds = array<i64: 8, 1>}, {transform_indices = @transform_8, window_bounds = array<i64: 2, 128>}]} {
    %c0 = arith.constant 0 : index
    %c0_0 = arith.constant 0 : index
    %0 = vector.load %arg1[%c0, %c0_0] : memref<2x128xi32, #tpu.memory_space<vmem>>, vector<1x128xi32>
    %c1 = arith.constant 1 : index
    %c0_1 = arith.constant 0 : index
    %1 = vector.load %arg1[%c1, %c0_1] : memref<2x128xi32, #tpu.memory_space<vmem>>, vector<1x128xi32>
    %2 = tpu.iota {dimensions = array<i32: 0>} : vector<16x128xi32>
    %3 = vector.broadcast %0 : vector<1x128xi32> to vector<16x128xi32>
    %4 = arith.cmpi eq, %2, %3 : vector<16x128xi32>
    %cst = arith.constant 1.000000e+00 : f32
    %cst_2 = arith.constant 0.000000e+00 : f32
    %5 = vector.broadcast %cst : f32 to vector<16x128xf32>
    %6 = vector.broadcast %cst_2 : f32 to vector<16x128xf32>
    %7 = arith.select %4, %5, %6 : vector<16x128xi1>, vector<16x128xf32>
    %8 = arith.truncf %7 : vector<16x128xf32> to vector<16x128xbf16>
    %9 = tpu.iota {dimensions = array<i32: 0>} : vector<16x128xi32>
    %10 = vector.broadcast %1 : vector<1x128xi32> to vector<16x128xi32>
    %11 = arith.cmpi eq, %9, %10 : vector<16x128xi32>
    %cst_3 = arith.constant 1.000000e+00 : f32
    %cst_4 = arith.constant 0.000000e+00 : f32
    %12 = vector.broadcast %cst_3 : f32 to vector<16x128xf32>
    %13 = vector.broadcast %cst_4 : f32 to vector<16x128xf32>
    %14 = arith.select %11, %12, %13 : vector<16x128xi1>, vector<16x128xf32>
    %15 = arith.truncf %14 : vector<16x128xf32> to vector<16x128xbf16>
    %c0_5 = arith.constant 0 : index
    %c0_6 = arith.constant 0 : index
    %16 = vector.load %arg2[%c0_5, %c0_6] : memref<128x16xbf16, #tpu.memory_space<vmem>>, vector<128x16xbf16>
    %cst_7 = arith.constant dense<0.000000e+00> : vector<128x128xf32>
    %17 = tpu.matmul %16, %8, %cst_7 {dimension_numbers = #tpu.dot_dimension_numbers<[1], [0], [0], [1], [0, 0, 1, 1], [], []>} : vector<128x16xbf16>, vector<16x128xbf16>, vector<128x128xf32> -> vector<128x128xf32>
    %c0_8 = arith.constant 0 : index
    %c0_9 = arith.constant 0 : index
    %18 = vector.load %arg3[%c0_8, %c0_9] : memref<128x16xbf16, #tpu.memory_space<vmem>>, vector<128x16xbf16>
    %cst_10 = arith.constant dense<0.000000e+00> : vector<128x128xf32>
    %19 = tpu.matmul %18, %15, %cst_10 {dimension_numbers = #tpu.dot_dimension_numbers<[1], [0], [0], [1], [0, 0, 1, 1], [], []>} : vector<128x16xbf16>, vector<16x128xbf16>, vector<128x128xf32> -> vector<128x128xf32>
    %20 = arith.addf %17, %19 : vector<128x128xf32>
    %c0_11 = arith.constant 0 : index
    %c0_12 = arith.constant 0 : index
    %21 = vector.load %arg4[%c0_11, %c0_12] : memref<128x1xf32, #tpu.memory_space<vmem>>, vector<128x1xf32>
    %22 = vector.broadcast %21 : vector<128x1xf32> to vector<128x128xf32>
    %23 = arith.addf %20, %22 : vector<128x128xf32>
    %cst_13 = arith.constant 0.000000e+00 : f32
    %24 = vector.broadcast %cst_13 : f32 to vector<128x128xf32>
    %25 = arith.maximumf %23, %24 : vector<128x128xf32>
    %c0_14 = arith.constant 0 : index
    %c0_15 = arith.constant 0 : index
    %26 = vector.load %arg5[%c0_14, %c0_15] : memref<32x128xbf16, #tpu.memory_space<vmem>>, vector<32x128xbf16>
    %27 = arith.truncf %25 : vector<128x128xf32> to vector<128x128xbf16>
    %cst_16 = arith.constant dense<0.000000e+00> : vector<32x128xf32>
    %28 = tpu.matmul %26, %27, %cst_16 {dimension_numbers = #tpu.dot_dimension_numbers<[1], [0], [0], [1], [0, 0, 1, 1], [], []>} : vector<32x128xbf16>, vector<128x128xbf16>, vector<32x128xf32> -> vector<32x128xf32>
    %c0_17 = arith.constant 0 : index
    %c0_18 = arith.constant 0 : index
    %29 = vector.load %arg6[%c0_17, %c0_18] : memref<32x1xf32, #tpu.memory_space<vmem>>, vector<32x1xf32>
    %30 = vector.broadcast %29 : vector<32x1xf32> to vector<32x128xf32>
    %31 = arith.addf %28, %30 : vector<32x128xf32>
    %cst_19 = arith.constant 0.000000e+00 : f32
    %32 = vector.broadcast %cst_19 : f32 to vector<32x128xf32>
    %33 = arith.maximumf %31, %32 : vector<32x128xf32>
    %c0_20 = arith.constant 0 : index
    %c0_21 = arith.constant 0 : index
    %34 = vector.load %arg7[%c0_20, %c0_21] : memref<8x32xbf16, #tpu.memory_space<vmem>>, vector<8x32xbf16>
    %35 = arith.truncf %33 : vector<32x128xf32> to vector<32x128xbf16>
    %cst_22 = arith.constant dense<0.000000e+00> : vector<8x128xf32>
    %36 = tpu.matmul %34, %35, %cst_22 {dimension_numbers = #tpu.dot_dimension_numbers<[1], [0], [0], [1], [0, 0, 1, 1], [], []>} : vector<8x32xbf16>, vector<32x128xbf16>, vector<8x128xf32> -> vector<8x128xf32>
    %c0_23 = arith.constant 0 : index
    %c0_24 = arith.constant 0 : index
    %37 = vector.load %arg8[%c0_23, %c0_24] : memref<8x1xf32, #tpu.memory_space<vmem>>, vector<8x1xf32>
    %38 = vector.broadcast %37 : vector<8x1xf32> to vector<8x128xf32>
    %39 = arith.addf %36, %38 : vector<8x128xf32>
    %40 = vector.extract_strided_slice %39 {offsets = [0, 0], sizes = [2, 128], strides = [1, 1]} : vector<8x128xf32> to vector<2x128xf32>
    %c0_25 = arith.constant 0 : index
    %c0_26 = arith.constant 0 : index
    %41 = vector.load %arg9[%c0_25, %c0_26] : memref<2x128xf32, #tpu.memory_space<vmem>>, vector<2x128xf32>
    tpu.vector_store %arg9[%c0_25, %c0_26], %40 {strides = array<i32>} : memref<2x128xf32, #tpu.memory_space<vmem>>, vector<2x128xf32>,
    return
  }
  func.func @transform_0(%arg0: i32) -> (i32, i32) {
    %c0_i32 = arith.constant 0 : i32
    %c0_i32_0 = arith.constant 0 : i32
    return %c0_i32, %arg0 : i32, i32
  }
  func.func @transform_1(%arg0: i32) -> (i32, i32) {
    %c0_i32 = arith.constant 0 : i32
    %c0_i32_0 = arith.constant 0 : i32
    %c0_i32_1 = arith.constant 0 : i32
    return %c0_i32, %c0_i32_0 : i32, i32
  }
  func.func @transform_2(%arg0: i32) -> (i32, i32) {
    %c0_i32 = arith.constant 0 : i32
    %c0_i32_0 = arith.constant 0 : i32
    %c0_i32_1 = arith.constant 0 : i32
    return %c0_i32, %c0_i32_0 : i32, i32
  }
  func.func @transform_3(%arg0: i32) -> (i32, i32) {
    %c0_i32 = arith.constant 0 : i32
    %c0_i32_0 = arith.constant 0 : i32
    %c0_i32_1 = arith.constant 0 : i32
    return %c0_i32, %c0_i32_0 : i32, i32
  }
  func.func @transform_4(%arg0: i32) -> (i32, i32) {
    %c0_i32 = arith.constant 0 : i32
    %c0_i32_0 = arith.constant 0 : i32
    %c0_i32_1 = arith.constant 0 : i32
    return %c0_i32, %c0_i32_0 : i32, i32
  }
  func.func @transform_5(%arg0: i32) -> (i32, i32) {
    %c0_i32 = arith.constant 0 : i32
    %c0_i32_0 = arith.constant 0 : i32
    %c0_i32_1 = arith.constant 0 : i32
    return %c0_i32, %c0_i32_0 : i32, i32
  }
  func.func @transform_6(%arg0: i32) -> (i32, i32) {
    %c0_i32 = arith.constant 0 : i32
    %c0_i32_0 = arith.constant 0 : i32
    %c0_i32_1 = arith.constant 0 : i32
    return %c0_i32, %c0_i32_0 : i32, i32
  }
  func.func @transform_7(%arg0: i32) -> (i32, i32) {
    %c0_i32 = arith.constant 0 : i32
    %c0_i32_0 = arith.constant 0 : i32
    %c0_i32_1 = arith.constant 0 : i32
    return %c0_i32, %c0_i32_0 : i32, i32
  }
  func.func @transform_8(%arg0: i32) -> (i32, i32) {
    %c0_i32 = arith.constant 0 : i32
    %c0_i32_0 = arith.constant 0 : i32
    return %c0_i32, %arg0 : i32, i32
  }
}

</mosaic_0001>

<llo_original>
// kernel: tpu_custom_call.1
$region0: #{tpu_custom_call.1}
  #allocation0 [shape = 'u32[]', space=smem, size = 0x4, offset = 0x4, fixed_abs, tag = 'smem constant byte address 0x4 - core index']
  #allocation1 [shape = 'u32[144,128]{1,0:T(1,128)}', space=vmem, size = 0x12000, scoped, tag = 'internal scratch']
  %s0 = inlined_call_operand.vmem [shape: s32[2,128], index: 0, kind: input, shape index: {}]
  %s1 = inlined_call_operand.vmem [shape: bf16[128,16], index: 1, kind: input, shape index: {}]
  %s2 = inlined_call_operand.vmem [shape: bf16[128,16], index: 2, kind: input, shape index: {}]
  %s3 = inlined_call_operand.vmem [shape: f32[128,1], index: 3, kind: input, shape index: {}]
  %s4 = inlined_call_operand.vmem [shape: bf16[32,128], index: 4, kind: input, shape index: {}]
  %s5 = inlined_call_operand.vmem [shape: f32[32,1], index: 5, kind: input, shape index: {}]
  %s6 = inlined_call_operand.vmem [shape: bf16[8,32], index: 6, kind: input, shape index: {}]
  %s7 = inlined_call_operand.vmem [shape: f32[8,1], index: 7, kind: input, shape index: {}]
  %s8 = inlined_call_operand.hbm [shape: f32[2,128], index: 8, kind: output, shape index: {}]
  %s9 = sld [smem:[#allocation0]]
  $region42: #{tpu_custom_call.1} parent=0
    _
  %s11 = ssub.s32 1, %s9
  %s12 = scalar_select 0, %s11, %s9
  $region1: #{tpu_custom_call.1} parent=0
    #allocation2 [shape = 'u8[1024]{0}', space=vmem, size = 0x400, scoped, tag = 'output window, operand 0, single buffered']
    #allocation3 [shape = 's32[1]{0}', space=sflag, size = 0x4, scoped, tag = 'scoped memory for tpu_custom_call.1']
    %13 = vsyncpa [#allocation3], 0
    // Predicated region
    $region2: #{tpu_custom_call.1} parent=1 // pred_check
      _
    $region3: #{tpu_custom_call.1} parent=1 // pred_check_branch
      %15 = sbr.rel (0) target = $region5
    $region4: #{tpu_custom_call.1} parent=1 // pred_region
      _
    $region5: #{tpu_custom_call.1} parent=1 // pred_fallthru
      _
    // Predicated region
    $region6: #{tpu_custom_call.1} parent=1 // pred_check
      _
    $region7: #{tpu_custom_call.1} parent=1 // pred_check_branch
      %17 = sbr.rel (0) target = $region9
    $region8: #{tpu_custom_call.1} parent=1 // pred_region
      _
    $region9: #{tpu_custom_call.1} parent=1 // pred_fallthru
      _
    // Predicated region
    $region10: #{tpu_custom_call.1} parent=1 // pred_check
      _
    $region11: #{tpu_custom_call.1} parent=1 // pred_check_branch
      %19 = sbr.rel (0) target = $region13
    $region12: #{tpu_custom_call.1} parent=1 // pred_region
      _
    $region13: #{tpu_custom_call.1} parent=1 // pred_fallthru
      _
    // Predicated region
    $region14: #{tpu_custom_call.1} parent=1 // pred_check
      _
    $region15: #{tpu_custom_call.1} parent=1 // pred_check_branch
      %21 = sbr.rel (0) target = $region17
    $region16: #{tpu_custom_call.1} parent=1 // pred_region
      _
    $region17: #{tpu_custom_call.1} parent=1 // pred_fallthru
      _
    // Predicated region
    $region18: #{tpu_custom_call.1} parent=1 // pred_check
      _
    $region19: #{tpu_custom_call.1} parent=1 // pred_check_branch
      %23 = sbr.rel (0) target = $region21
    $region20: #{tpu_custom_call.1} parent=1 // pred_region
      _
    $region21: #{tpu_custom_call.1} parent=1 // pred_fallthru
      _
    // Predicated region
    $region22: #{tpu_custom_call.1} parent=1 // pred_check
      _
    $region23: #{tpu_custom_call.1} parent=1 // pred_check_branch
      %25 = sbr.rel (0) target = $region25
    $region24: #{tpu_custom_call.1} parent=1 // pred_region
      _
    $region25: #{tpu_custom_call.1} parent=1 // pred_fallthru
      _
    // Predicated region
    $region26: #{tpu_custom_call.1} parent=1 // pred_check
      _
    $region27: #{tpu_custom_call.1} parent=1 // pred_check_branch
      %27 = sbr.rel (0) target = $region29
    $region28: #{tpu_custom_call.1} parent=1 // pred_region
      _
    $region29: #{tpu_custom_call.1} parent=1 // pred_fallthru
      _
    // Predicated region
    $region30: #{tpu_custom_call.1} parent=1 // pred_check
      _
    $region31: #{tpu_custom_call.1} parent=1 // pred_check_branch
      %29 = sbr.rel (0) target = $region33
    $region32: #{tpu_custom_call.1} parent=1 // pred_region
      _
    $region33: #{tpu_custom_call.1} parent=1 // pred_fallthru
      _
    %v31 = vld [vmem:[%s0] sm:$0x1]
    %v32 = vld [vmem:[%s0 + $0x1] sm:$0x1]
    %v33 = vlaneseq
    %v34 = vshrl.u32 %v33, 7
    %v35 = vadd.s32 %v34, 8
    %v36 = vlaneseq
    %v37 = vshrl.u32 %v36, 7
    %v38 = vsub.s32 0, %v37
    %v39 = vrot.slane %v31, %v38
    %vm40 = vcmp.eq.s32.totalorder %v34, %v39
    %vm41 = vcmp.eq.s32.totalorder %v35, %v39
    %v42 = vsel %vm40, 1.0, 0.0
    %v43 = vsel %vm41, 1.0, 0.0
    %v44 = vpack.c.bf16 %v43, %v42
    %v45 = vlaneseq
    %v46 = vshrl.u32 %v45, 7
    %v47 = vsub.s32 0, %v46
    %v48 = vrot.slane %v32, %v47
    %vm49 = vcmp.eq.s32.totalorder %v34, %v48
    %vm50 = vcmp.eq.s32.totalorder %v35, %v48
    %v51 = vsel %vm49, 1.0, 0.0
    %v52 = vsel %vm50, 1.0, 0.0
    %v53 = vpack.c.bf16 %v52, %v51
    %v54 = vld [vmem:[%s1] sm:$0xf]
    %v55 = vld [vmem:[%s1 + $0x4] sm:$0xf]
    %v56 = vld [vmem:[%s1 + $0x8] sm:$0xf]
    %v57 = vld [vmem:[%s1 + $0xc] sm:$0xf]
    %v58 = vld [vmem:[%s1 + $0x10] sm:$0xf]
    %v59 = vld [vmem:[%s1 + $0x14] sm:$0xf]
    %v60 = vld [vmem:[%s1 + $0x18] sm:$0xf]
    %v61 = vld [vmem:[%s1 + $0x1c] sm:$0xf]
    %v62 = vld [vmem:[%s1 + $0x20] sm:$0xf]
    %v63 = vld [vmem:[%s1 + $0x24] sm:$0xf]
    %v64 = vld [vmem:[%s1 + $0x28] sm:$0xf]
    %v65 = vld [vmem:[%s1 + $0x2c] sm:$0xf]
    %v66 = vld [vmem:[%s1 + $0x30] sm:$0xf]
    %v67 = vld [vmem:[%s1 + $0x34] sm:$0xf]
    %v68 = vld [vmem:[%s1 + $0x38] sm:$0xf]
    %v69 = vld [vmem:[%s1 + $0x3c] sm:$0xf]
    %v70 = vld [vmem:[%s2] sm:$0xf]
    %v71 = vld [vmem:[%s2 + $0x4] sm:$0xf]
    %v72 = vld [vmem:[%s2 + $0x8] sm:$0xf]
    %v73 = vld [vmem:[%s2 + $0xc] sm:$0xf]
    %v74 = vld [vmem:[%s2 + $0x10] sm:$0xf]
    %v75 = vld [vmem:[%s2 + $0x14] sm:$0xf]
    %v76 = vld [vmem:[%s2 + $0x18] sm:$0xf]
    %v77 = vld [vmem:[%s2 + $0x1c] sm:$0xf]
    %v78 = vld [vmem:[%s2 + $0x20] sm:$0xf]
    %v79 = vld [vmem:[%s2 + $0x24] sm:$0xf]
    %v80 = vld [vmem:[%s2 + $0x28] sm:$0xf]
    %v81 = vld [vmem:[%s2 + $0x2c] sm:$0xf]
    %v82 = vld [vmem:[%s2 + $0x30] sm:$0xf]
    %v83 = vld [vmem:[%s2 + $0x34] sm:$0xf]
    %v84 = vld [vmem:[%s2 + $0x38] sm:$0xf]
    %v85 = vld [vmem:[%s2 + $0x3c] sm:$0xf]
    %v102 = vunpack.c.l.b16 %v70
    %v103 = vunpack.c.l.b16 %v71
    %v104 = vunpack.c.l.b16 %v72
    %v105 = vunpack.c.l.b16 %v73
    %v106 = vunpack.c.l.b16 %v74
    %v107 = vunpack.c.l.b16 %v75
    %v108 = vunpack.c.l.b16 %v76
    %v109 = vunpack.c.l.b16 %v77
    %v110 = vunpack.c.l.b16 %v78
    %v111 = vunpack.c.l.b16 %v79
    %v112 = vunpack.c.l.b16 %v80
    %v113 = vunpack.c.l.b16 %v81
    %v114 = vunpack.c.l.b16 %v82
    %v115 = vunpack.c.l.b16 %v83
    %v116 = vunpack.c.l.b16 %v84
    %v117 = vunpack.c.l.b16 %v85
    %v118 = vpack.c.b16 %v103, %v102
    %v119 = vpack.c.b16 %v105, %v104
    %v120 = vpack.c.b16 %v107, %v106
    %v121 = vpack.c.b16 %v109, %v108
    %v122 = vpack.c.b16 %v111, %v110
    %v123 = vpack.c.b16 %v113, %v112
    %v124 = vpack.c.b16 %v115, %v114
    %v125 = vpack.c.b16 %v117, %v116
    %vm126 = vcmask 130048
    %v128 = vsel %vm126, %v118, 0
    %v131 = vsel %vm126, %v119, 0
    %v134 = vsel %vm126, %v120, 0
    %v137 = vsel %vm126, %v121, 0
    %v140 = vsel %vm126, %v122, 0
    %v143 = vsel %vm126, %v123, 0
    %v146 = vsel %vm126, %v124, 0
    %v149 = vsel %vm126, %v125, 0
    %151 = vmatprep.subr.bf16.mxu0 0
    %152 = vmatpush1.bf16.msra.mxu0 %v53
    %153 = vmatprep.subr.bf16.mxu0 0
    %154 = vmatpush1.bf16.msra.mxu0 0
    %155 = vmatprep.subr.bf16.mxu0 0
    %156 = vmatpush1.bf16.msra.mxu0 0
    %157 = vmatprep.subr.bf16.mxu0 0
    %158 = vmatpush1.bf16.msra.mxu0 0
    %159 = vmatprep.subr.bf16.mxu0 0
    %160 = vmatpush1.bf16.msra.mxu0 0
    %161 = vmatprep.subr.bf16.mxu0 0
    %162 = vmatpush1.bf16.msra.mxu0 0
    %163 = vmatprep.subr.bf16.mxu0 0
    %164 = vmatpush1.bf16.msra.mxu0 0
    %165 = vmatprep.subr.bf16.mxu0 0
    %166 = vmatpush1.bf16.msra.mxu0 0
    %167 = vmatprep.subr.bf16.mxu0 0
    %168 = vmatpush1.bf16.msra.mxu0 0
    %169 = vmatprep.subr.bf16.mxu0 0
    %170 = vmatpush1.bf16.msra.mxu0 0
    %171 = vmatprep.subr.bf16.mxu0 0
    %172 = vmatpush1.bf16.msra.mxu0 0
    %173 = vmatprep.subr.bf16.mxu0 0
    %174 = vmatpush1.bf16.msra.mxu0 0
    %175 = vmatprep.subr.bf16.mxu0 0
    %176 = vmatpush1.bf16.msra.mxu0 0
    %177 = vmatprep.subr.bf16.mxu0 0
    %178 = vmatpush1.bf16.msra.mxu0 0
    %179 = vmatprep.subr.bf16.mxu0 0
    %180 = vmatpush1.bf16.msra.mxu0 0
    %181 = vmatprep.subr.bf16.mxu0 0
    %182 = vmatpush1.bf16.msra.mxu0 0
    %183 = vmatprep.mubr.bf16.mxu0 0
    %184 = vmatmul.mubr.bf16.gmra.mrb[0].mxu0 %v128
    %v185 = vpop.f32.mrb[0].mxu0
    %v186 = vadd.f32 0.0, %v185
    %v187 = vpop.f32.mrb[0].mxu0
    %v188 = vpop.f32.mrb[0].mxu0
    %v189 = vadd.f32 0.0, %v188
    %v190 = vpop.f32.mrb[0].mxu0
    %191 = vmatprep.mubr.bf16.mxu0 0
    %192 = vmatmul.mubr.bf16.gmra.mrb[0].mxu0 %v131
    %v193 = vpop.f32.mrb[0].mxu0
    %v194 = vadd.f32 0.0, %v193
    %v195 = vpop.f32.mrb[0].mxu0
    %v196 = vpop.f32.mrb[0].mxu0
    %v197 = vadd.f32 0.0, %v196
    %v198 = vpop.f32.mrb[0].mxu0
    %199 = vmatprep.mubr.bf16.mxu0 0
    %200 = vmatmul.mubr.bf16.gmra.mrb[0].mxu0 %v134
    %v201 = vpop.f32.mrb[0].mxu0
    %v202 = vadd.f32 0.0, %v201
    %v203 = vpop.f32.mrb[0].mxu0
    %v204 = vpop.f32.mrb[0].mxu0
    %v205 = vadd.f32 0.0, %v204
    %v206 = vpop.f32.mrb[0].mxu0
    %207 = vmatprep.mubr.bf16.mxu0 0
    %208 = vmatmul.mubr.bf16.gmra.mrb[0].mxu0 %v137
    %v209 = vpop.f32.mrb[0].mxu0
    %v210 = vadd.f32 0.0, %v209
    %v211 = vpop.f32.mrb[0].mxu0
    %v212 = vpop.f32.mrb[0].mxu0
    %v213 = vadd.f32 0.0, %v212
    %v214 = vpop.f32.mrb[0].mxu0
    %215 = vmatprep.mubr.bf16.mxu0 0
    %216 = vmatmul.mubr.bf16.gmra.mrb[0].mxu0 %v140
    %v217 = vpop.f32.mrb[0].mxu0
    %v218 = vadd.f32 0.0, %v217
    %v219 = vpop.f32.mrb[0].mxu0
    %v220 = vpop.f32.mrb[0].mxu0
    %v221 = vadd.f32 0.0, %v220
    %v222 = vpop.f32.mrb[0].mxu0
    %223 = vmatprep.mubr.bf16.mxu0 0
    %224 = vmatmul.mubr.bf16.gmra.mrb[0].mxu0 %v143
    %v225 = vpop.f32.mrb[0].mxu0
    %v226 = vadd.f32 0.0, %v225
    %v227 = vpop.f32.mrb[0].mxu0
    %v228 = vpop.f32.mrb[0].mxu0
    %v229 = vadd.f32 0.0, %v228
    %v230 = vpop.f32.mrb[0].mxu0
    %231 = vmatprep.mubr.bf16.mxu0 0
    %232 = vmatmul.mubr.bf16.gmra.mrb[0].mxu0 %v146
    %v233 = vpop.f32.mrb[0].mxu0
    %v234 = vadd.f32 0.0, %v233
    %v235 = vpop.f32.mrb[0].mxu0
    %v236 = vpop.f32.mrb[0].mxu0
    %v237 = vadd.f32 0.0, %v236
    %v238 = vpop.f32.mrb[0].mxu0
    %239 = vmatprep.mubr.bf16.mxu0 0
    %240 = vmatmul.mubr.bf16.gmra.mrb[0].mxu0 %v149
    %v241 = vpop.f32.mrb[0].mxu0
    %v242 = vadd.f32 0.0, %v241
    %v243 = vpop.f32.mrb[0].mxu0
    %v244 = vpop.f32.mrb[0].mxu0
    %v245 = vadd.f32 0.0, %v244
    %v246 = vpop.f32.mrb[0].mxu0
    %247 = vdwg.mxu0
    %v264 = vunpack.c.l.b16 %v54
    %v265 = vunpack.c.l.b16 %v55
    %v266 = vunpack.c.l.b16 %v56
    %v267 = vunpack.c.l.b16 %v57
    %v268 = vunpack.c.l.b16 %v58
    %v269 = vunpack.c.l.b16 %v59
    %v270 = vunpack.c.l.b16 %v60
    %v271 = vunpack.c.l.b16 %v61
    %v272 = vunpack.c.l.b16 %v62
    %v273 = vunpack.c.l.b16 %v63
    %v274 = vunpack.c.l.b16 %v64
    %v275 = vunpack.c.l.b16 %v65
    %v276 = vunpack.c.l.b16 %v66
    %v277 = vunpack.c.l.b16 %v67
    %v278 = vunpack.c.l.b16 %v68
    %v279 = vunpack.c.l.b16 %v69
    %v280 = vpack.c.b16 %v265, %v264
    %v281 = vpack.c.b16 %v267, %v266
    %v282 = vpack.c.b16 %v269, %v268
    %v283 = vpack.c.b16 %v271, %v270
    %v284 = vpack.c.b16 %v273, %v272
    %v285 = vpack.c.b16 %v275, %v274
    %v286 = vpack.c.b16 %v277, %v276
    %v287 = vpack.c.b16 %v279, %v278
    %v289 = vsel %vm126, %v280, 0
    %v292 = vsel %vm126, %v281, 0
    %v295 = vsel %vm126, %v282, 0
    %v298 = vsel %vm126, %v283, 0
    %v301 = vsel %vm126, %v284, 0
    %v304 = vsel %vm126, %v285, 0
    %v307 = vsel %vm126, %v286, 0
    %v310 = vsel %vm126, %v287, 0
    %312 = vmatprep.subr.bf16.mxu0 0
    %313 = vmatpush1.bf16.msra.mxu0 %v44
    %314 = vmatprep.subr.bf16.mxu0 0
    %315 = vmatpush1.bf16.msra.mxu0 0
    %316 = vmatprep.subr.bf16.mxu0 0
    %317 = vmatpush1.bf16.msra.mxu0 0
    %318 = vmatprep.subr.bf16.mxu0 0
    %319 = vmatpush1.bf16.msra.mxu0 0
    %320 = vmatprep.subr.bf16.mxu0 0
    %321 = vmatpush1.bf16.msra.mxu0 0
    %322 = vmatprep.subr.bf16.mxu0 0
    %323 = vmatpush1.bf16.msra.mxu0 0
    %324 = vmatprep.subr.bf16.mxu0 0
    %325 = vmatpush1.bf16.msra.mxu0 0
    %326 = vmatprep.subr.bf16.mxu0 0
    %327 = vmatpush1.bf16.msra.mxu0 0
    %328 = vmatprep.subr.bf16.mxu0 0
    %329 = vmatpush1.bf16.msra.mxu0 0
    %330 = vmatprep.subr.bf16.mxu0 0
    %331 = vmatpush1.bf16.msra.mxu0 0
    %332 = vmatprep.subr.bf16.mxu0 0
    %333 = vmatpush1.bf16.msra.mxu0 0
    %334 = vmatprep.subr.bf16.mxu0 0
    %335 = vmatpush1.bf16.msra.mxu0 0
    %336 = vmatprep.subr.bf16.mxu0 0
    %337 = vmatpush1.bf16.msra.mxu0 0
    %338 = vmatprep.subr.bf16.mxu0 0
    %339 = vmatpush1.bf16.msra.mxu0 0
    %340 = vmatprep.subr.bf16.mxu0 0
    %341 = vmatpush1.bf16.msra.mxu0 0
    %342 = vmatprep.subr.bf16.mxu0 0
    %343 = vmatpush1.bf16.msra.mxu0 0
    %344 = vmatprep.mubr.bf16.mxu0 0
    %345 = vmatmul.mubr.bf16.gmra.mrb[0].mxu0 %v289
    %v346 = vpop.f32.mrb[0].mxu0
    %v347 = vadd.f32 %v186, %v346
    %v348 = vpop.f32.mrb[0].mxu0
    %v349 = vpop.f32.mrb[0].mxu0
    %v350 = vadd.f32 %v189, %v349
    %v351 = vpop.f32.mrb[0].mxu0
    %352 = vmatprep.mubr.bf16.mxu0 0
    %353 = vmatmul.mubr.bf16.gmra.mrb[0].mxu0 %v292
    %v354 = vpop.f32.mrb[0].mxu0
    %v355 = vadd.f32 %v194, %v354
    %v356 = vpop.f32.mrb[0].mxu0
    %v357 = vpop.f32.mrb[0].mxu0
    %v358 = vadd.f32 %v197, %v357
    %v359 = vpop.f32.mrb[0].mxu0
    %360 = vmatprep.mubr.bf16.mxu0 0
    %361 = vmatmul.mubr.bf16.gmra.mrb[0].mxu0 %v295
    %v362 = vpop.f32.mrb[0].mxu0
    %v363 = vadd.f32 %v202, %v362
    %v364 = vpop.f32.mrb[0].mxu0
    %v365 = vpop.f32.mrb[0].mxu0
    %v366 = vadd.f32 %v205, %v365
    %v367 = vpop.f32.mrb[0].mxu0
    %368 = vmatprep.mubr.bf16.mxu0 0
    %369 = vmatmul.mubr.bf16.gmra.mrb[0].mxu0 %v298
    %v370 = vpop.f32.mrb[0].mxu0
    %v371 = vadd.f32 %v210, %v370
    %v372 = vpop.f32.mrb[0].mxu0
    %v373 = vpop.f32.mrb[0].mxu0
    %v374 = vadd.f32 %v213, %v373
    %v375 = vpop.f32.mrb[0].mxu0
    %376 = vmatprep.mubr.bf16.mxu0 0
    %377 = vmatmul.mubr.bf16.gmra.mrb[0].mxu0 %v301
    %v378 = vpop.f32.mrb[0].mxu0
    %v379 = vadd.f32 %v218, %v378
    %v380 = vpop.f32.mrb[0].mxu0
    %v381 = vpop.f32.mrb[0].mxu0
    %v382 = vadd.f32 %v221, %v381
    %v383 = vpop.f32.mrb[0].mxu0
    %384 = vmatprep.mubr.bf16.mxu0 0
    %385 = vmatmul.mubr.bf16.gmra.mrb[0].mxu0 %v304
    %v386 = vpop.f32.mrb[0].mxu0
    %v387 = vadd.f32 %v226, %v386
    %v388 = vpop.f32.mrb[0].mxu0
    %v389 = vpop.f32.mrb[0].mxu0
    %v390 = vadd.f32 %v229, %v389
    %v391 = vpop.f32.mrb[0].mxu0
    %392 = vmatprep.mubr.bf16.mxu0 0
    %393 = vmatmul.mubr.bf16.gmra.mrb[0].mxu0 %v307
    %v394 = vpop.f32.mrb[0].mxu0
    %v395 = vadd.f32 %v234, %v394
    %v396 = vpop.f32.mrb[0].mxu0
    %v397 = vpop.f32.mrb[0].mxu0
    %v398 = vadd.f32 %v237, %v397
    %v399 = vpop.f32.mrb[0].mxu0
    %400 = vmatprep.mubr.bf16.mxu0 0
    %401 = vmatmul.mubr.bf16.gmra.mrb[0].mxu0 %v310
    %v402 = vpop.f32.mrb[0].mxu0
    %v403 = vadd.f32 %v242, %v402
    %v404 = vpop.f32.mrb[0].mxu0
    %v405 = vpop.f32.mrb[0].mxu0
    %v406 = vadd.f32 %v245, %v405
    %v407 = vpop.f32.mrb[0].mxu0
    %408 = vdwg.mxu0
    %v409 = vld [vmem:[%s3] sm:$0xff]
    %v410 = vld [vmem:[%s3 + $0x8] sm:$0xff]
    %v411 = vld [vmem:[%s3 + $0x10] sm:$0xff]
    %v412 = vld [vmem:[%s3 + $0x18] sm:$0xff]
    %v413 = vld [vmem:[%s3 + $0x20] sm:$0xff]
    %v414 = vld [vmem:[%s3 + $0x28] sm:$0xff]
    %v415 = vld [vmem:[%s3 + $0x30] sm:$0xff]
    %v416 = vld [vmem:[%s3 + $0x38] sm:$0xff]
    %v417 = vld [vmem:[%s3 + $0x40] sm:$0xff]
    %v418 = vld [vmem:[%s3 + $0x48] sm:$0xff]
    %v419 = vld [vmem:[%s3 + $0x50] sm:$0xff]
    %v420 = vld [vmem:[%s3 + $0x58] sm:$0xff]
    %v421 = vld [vmem:[%s3 + $0x60] sm:$0xff]
    %v422 = vld [vmem:[%s3 + $0x68] sm:$0xff]
    %v423 = vld [vmem:[%s3 + $0x70] sm:$0xff]
    %v424 = vld [vmem:[%s3 + $0x78] sm:$0xff]
    %426 = vset.pattern.permute.xlu0 0
    %427 = vperm.xlu0 %426, %v409
    %v428 = vpop.permute.xlu0 %427
    %431 = vset.pattern.permute.xlu0 0
    %432 = vperm.xlu0 %431, %v410
    %v433 = vpop.permute.xlu0 %432
    %436 = vset.pattern.permute.xlu0 0
    %437 = vperm.xlu0 %436, %v411
    %v438 = vpop.permute.xlu0 %437
    %441 = vset.pattern.permute.xlu0 0
    %442 = vperm.xlu0 %441, %v412
    %v443 = vpop.permute.xlu0 %442
    %446 = vset.pattern.permute.xlu0 0
    %447 = vperm.xlu0 %446, %v413
    %v448 = vpop.permute.xlu0 %447
    %451 = vset.pattern.permute.xlu0 0
    %452 = vperm.xlu0 %451, %v414
    %v453 = vpop.permute.xlu0 %452
    %456 = vset.pattern.permute.xlu0 0
    %457 = vperm.xlu0 %456, %v415
    %v458 = vpop.permute.xlu0 %457
    %461 = vset.pattern.permute.xlu0 0
    %462 = vperm.xlu0 %461, %v416
    %v463 = vpop.permute.xlu0 %462
    %466 = vset.pattern.permute.xlu0 0
    %467 = vperm.xlu0 %466, %v417
    %v468 = vpop.permute.xlu0 %467
    %471 = vset.pattern.permute.xlu0 0
    %472 = vperm.xlu0 %471, %v418
    %v473 = vpop.permute.xlu0 %472
    %476 = vset.pattern.permute.xlu0 0
    %477 = vperm.xlu0 %476, %v419
    %v478 = vpop.permute.xlu0 %477
    %481 = vset.pattern.permute.xlu0 0
    %482 = vperm.xlu0 %481, %v420
    %v483 = vpop.permute.xlu0 %482
    %486 = vset.pattern.permute.xlu0 0
    %487 = vperm.xlu0 %486, %v421
    %v488 = vpop.permute.xlu0 %487
    %491 = vset.pattern.permute.xlu0 0
    %492 = vperm.xlu0 %491, %v422
    %v493 = vpop.permute.xlu0 %492
    %496 = vset.pattern.permute.xlu0 0
    %497 = vperm.xlu0 %496, %v423
    %v498 = vpop.permute.xlu0 %497
    %501 = vset.pattern.permute.xlu0 0
    %502 = vperm.xlu0 %501, %v424
    %v503 = vpop.permute.xlu0 %502
    %v505 = vadd.f32 %v347, %v428
    %v506 = vadd.f32 %v350, %v433
    %v507 = vadd.f32 %v355, %v438
    %v508 = vadd.f32 %v358, %v443
    %v509 = vadd.f32 %v363, %v448
    %v510 = vadd.f32 %v366, %v453
    %v511 = vadd.f32 %v371, %v458
    %v512 = vadd.f32 %v374, %v463
    %v513 = vadd.f32 %v379, %v468
    %v514 = vadd.f32 %v382, %v473
    %v515 = vadd.f32 %v387, %v478
    %v516 = vadd.f32 %v390, %v483
    %v517 = vadd.f32 %v395, %v488
    %v518 = vadd.f32 %v398, %v493
    %v519 = vadd.f32 %v403, %v498
    %v520 = vadd.f32 %v406, %v503
    %v521 = vmax.f32 %v505, 0.0
    %v522 = vmax.f32 %v506, 0.0
    %v523 = vmax.f32 %v507, 0.0
    %v524 = vmax.f32 %v508, 0.0
    %v525 = vmax.f32 %v509, 0.0
    %v526 = vmax.f32 %v510, 0.0
    %v527 = vmax.f32 %v511, 0.0
    %v528 = vmax.f32 %v512, 0.0
    %v529 = vmax.f32 %v513, 0.0
    %v530 = vmax.f32 %v514, 0.0
    %v531 = vmax.f32 %v515, 0.0
    %v532 = vmax.f32 %v516, 0.0
    %v533 = vmax.f32 %v517, 0.0
    %v534 = vmax.f32 %v518, 0.0
    %v535 = vmax.f32 %v519, 0.0
    %v536 = vmax.f32 %v520, 0.0
    %v537 = vld [vmem:[%s4] sm:$0xf]
    %v538 = vld [vmem:[%s4 + $0x4] sm:$0xf]
    %v539 = vld [vmem:[%s4 + $0x8] sm:$0xf]
    %v540 = vld [vmem:[%s4 + $0xc] sm:$0xf]
    %v541 = vpack.c.bf16 %v522, %v521
    %v542 = vpack.c.bf16 %v524, %v523
    %v543 = vpack.c.bf16 %v526, %v525
    %v544 = vpack.c.bf16 %v528, %v527
    %v545 = vpack.c.bf16 %v530, %v529
    %v546 = vpack.c.bf16 %v532, %v531
    %v547 = vpack.c.bf16 %v534, %v533
    %v548 = vpack.c.bf16 %v536, %v535
    %v549 = vld [vmem:[%s5] sm:$0xff]
    %v550 = vld [vmem:[%s5 + $0x8] sm:$0xff]
    %v551 = vld [vmem:[%s5 + $0x10] sm:$0xff]
    %v552 = vld [vmem:[%s5 + $0x18] sm:$0xff]
    %554 = vset.pattern.permute.xlu0 0
    %555 = vperm.xlu0 %554, %v549
    %v556 = vpop.permute.xlu0 %555
    %559 = vset.pattern.permute.xlu0 0
    %560 = vperm.xlu0 %559, %v550
    %v561 = vpop.permute.xlu0 %560
    %564 = vset.pattern.permute.xlu0 0
    %565 = vperm.xlu0 %564, %v551
    %v566 = vpop.permute.xlu0 %565
    %569 = vset.pattern.permute.xlu0 0
    %570 = vperm.xlu0 %569, %v552
    %v571 = vpop.permute.xlu0 %570
    %v577 = vunpack.c.l.b16 %v537
    %v578 = vunpack.c.l.b16 %v538
    %v579 = vunpack.c.l.b16 %v539
    %v580 = vunpack.c.l.b16 %v540
    %v581 = vpack.c.b16 %v578, %v577
    %v582 = vpack.c.b16 %v580, %v579
    %585 = vmatprep.subr.bf16.mxu0 0
    %586 = vmatpush1.bf16.msra.mxu0 %v541
    %587 = vmatprep.subr.bf16.mxu0 0
    %588 = vmatpush1.bf16.msra.mxu0 %v542
    %589 = vmatprep.subr.bf16.mxu0 0
    %590 = vmatpush1.bf16.msra.mxu0 %v543
    %591 = vmatprep.subr.bf16.mxu0 0
    %592 = vmatpush1.bf16.msra.mxu0 %v544
    %593 = vmatprep.subr.bf16.mxu0 0
    %594 = vmatpush1.bf16.msra.mxu0 %v545
    %595 = vmatprep.subr.bf16.mxu0 0
    %596 = vmatpush1.bf16.msra.mxu0 %v546
    %597 = vmatprep.subr.bf16.mxu0 0
    %598 = vmatpush1.bf16.msra.mxu0 %v547
    %599 = vmatprep.subr.bf16.mxu0 0
    %600 = vmatpush1.bf16.msra.mxu0 %v548
    %601 = vmatprep.subr.bf16.mxu0 0
    %602 = vmatpush1.bf16.msra.mxu0 0
    %603 = vmatprep.subr.bf16.mxu0 0
    %604 = vmatpush1.bf16.msra.mxu0 0
    %605 = vmatprep.subr.bf16.mxu0 0
    %606 = vmatpush1.bf16.msra.mxu0 0
    %607 = vmatprep.subr.bf16.mxu0 0
    %608 = vmatpush1.bf16.msra.mxu0 0
    %609 = vmatprep.subr.bf16.mxu0 0
    %610 = vmatpush1.bf16.msra.mxu0 0
    %611 = vmatprep.subr.bf16.mxu0 0
    %612 = vmatpush1.bf16.msra.mxu0 0
    %613 = vmatprep.subr.bf16.mxu0 0
    %614 = vmatpush1.bf16.msra.mxu0 0
    %615 = vmatprep.subr.bf16.mxu0 0
    %616 = vmatpush1.bf16.msra.mxu0 0
    %617 = vmatprep.mubr.bf16.mxu0 0
    %618 = vmatmul.mubr.bf16.gmra.mrb[0].mxu0 %v581
    %v619 = vpop.f32.mrb[0].mxu0
    %v620 = vadd.f32 %v556, %v619
    %v621 = vpop.f32.mrb[0].mxu0
    %v622 = vpop.f32.mrb[0].mxu0
    %v623 = vadd.f32 %v561, %v622
    %v624 = vpop.f32.mrb[0].mxu0
    %625 = vmatprep.mubr.bf16.mxu0 0
    %626 = vmatmul.mubr.bf16.gmra.mrb[0].mxu0 %v582
    %v627 = vpop.f32.mrb[0].mxu0
    %v628 = vadd.f32 %v566, %v627
    %v629 = vpop.f32.mrb[0].mxu0
    %v630 = vpop.f32.mrb[0].mxu0
    %v631 = vadd.f32 %v571, %v630
    %v632 = vpop.f32.mrb[0].mxu0
    %633 = vdwg.mxu0
    %v634 = vmax.f32 %v620, 0.0
    %v635 = vmax.f32 %v623, 0.0
    %v636 = vmax.f32 %v628, 0.0
    %v637 = vmax.f32 %v631, 0.0
    %v638 = vld [vmem:[%s6] sm:$0xf]
    %v639 = vpack.c.bf16 %v635, %v634
    %v640 = vpack.c.bf16 %v637, %v636
    %v641 = vld [vmem:[%s7] sm:$0xff]
    %643 = vset.pattern.permute.xlu0 0
    %644 = vperm.xlu0 %643, %v641
    %v645 = vpop.permute.xlu0 %644
    %vm647 = vcmask 261120
    %v649 = vsel %vm647, %v638, 0
    %651 = vmatprep.subr.bf16.mxu0 0
    %652 = vmatpush1.bf16.msra.mxu0 %v639
    %653 = vmatprep.subr.bf16.mxu0 0
    %654 = vmatpush1.bf16.msra.mxu0 %v640
    %655 = vmatprep.subr.bf16.mxu0 0
    %656 = vmatpush1.bf16.msra.mxu0 0
    %657 = vmatprep.subr.bf16.mxu0 0
    %658 = vmatpush1.bf16.msra.mxu0 0
    %659 = vmatprep.subr.bf16.mxu0 0
    %660 = vmatpush1.bf16.msra.mxu0 0
    %661 = vmatprep.subr.bf16.mxu0 0
    %662 = vmatpush1.bf16.msra.mxu0 0
    %663 = vmatprep.subr.bf16.mxu0 0
    %664 = vmatpush1.bf16.msra.mxu0 0
    %665 = vmatprep.subr.bf16.mxu0 0
    %666 = vmatpush1.bf16.msra.mxu0 0
    %667 = vmatprep.subr.bf16.mxu0 0
    %668 = vmatpush1.bf16.msra.mxu0 0
    %669 = vmatprep.subr.bf16.mxu0 0
    %670 = vmatpush1.bf16.msra.mxu0 0
    %671 = vmatprep.subr.bf16.mxu0 0
    %672 = vmatpush1.bf16.msra.mxu0 0
    %673 = vmatprep.subr.bf16.mxu0 0
    %674 = vmatpush1.bf16.msra.mxu0 0
    %675 = vmatprep.subr.bf16.mxu0 0
    %676 = vmatpush1.bf16.msra.mxu0 0
    %677 = vmatprep.subr.bf16.mxu0 0
    %678 = vmatpush1.bf16.msra.mxu0 0
    %679 = vmatprep.subr.bf16.mxu0 0
    %680 = vmatpush1.bf16.msra.mxu0 0
    %681 = vmatprep.subr.bf16.mxu0 0
    %682 = vmatpush1.bf16.msra.mxu0 0
    %683 = vmatprep.mubr.bf16.mxu0 0
    %684 = vmatmul.mubr.bf16.gmra.mrb[0].mxu0 %v649
    %v685 = vpop.f32.mrb[0].mxu0
    %v686 = vadd.f32 %v645, %v685
    %v687 = vpop.f32.mrb[0].mxu0
    %v688 = vpop.f32.mrb[0].mxu0
    %v689 = vpop.f32.mrb[0].mxu0
    %690 = vdwg.mxu0
    %691 = vst [vmem:[#allocation2] sm:$0x3] %v686
    // Predicated region
    $region34: #{tpu_custom_call.1} parent=1 // pred_check
      _
    $region35: #{tpu_custom_call.1} parent=1 // pred_check_branch
      %693 = sbr.rel (0) target = $region37
    $region36: #{tpu_custom_call.1} parent=1 // pred_region
      %s695 = ssub.s32 32, 32
      %696 = vsyncadd [#allocation3], %s695
      %s698 = sshll.u32 [#allocation2], 4
      %s699 = int_to_ptr.vmem [resolvable:$true] %s698
      %701 = dma.vmem_to_hbm [thread:$0]  %s699, 32, %s8, [#allocation3]
    $region37: #{tpu_custom_call.1} parent=1 // pred_fallthru
      _
    // Predicated region
    $region38: #{tpu_custom_call.1} parent=1 // pred_check
      _
    $region39: #{tpu_custom_call.1} parent=1 // pred_check_branch
      %703 = sbr.rel (0) target = $region41
    $region40: #{tpu_custom_call.1} parent=1 // pred_region
      %704 = dma.done [#allocation3], 32
    $region41: #{tpu_custom_call.1} parent=1 // pred_fallthru
      _
    %705 = vsyncpa [#allocation3], 1

</llo_original>
